<compile_context>
chip_gen: v7x
topology: tpu7x:2x2x1
jax: 0.10.0
libtpu: 0.0.40
codegen_flags: <defaults>
</compile_context>

<pallas_src>
import functools

import jax
import jax.numpy as jnp
from jax.experimental import pallas as pl
from jax.experimental.pallas import tpu as pltpu


def gcn_kernel(a_ref, x_ref, w_ref, b_ref, o_ref):
    # grid = (node_tiles, K); node tiles are "parallel", K is the "arbitrary" reduction.
    k = pl.program_id(1)

    @pl.when(k == 0)
    def _():
        o_ref[...] = jnp.zeros_like(o_ref)

    a = a_ref[0]      # (tm, N)      row tile of A[k]
    x = x_ref[...]    # (N, B*D)     whole batch, lane-dense, resident across grid
    w = w_ref[0]      # (B*D, B*H)   block-diagonal weight for support k

    # support tile = A[k][rows, :] @ X  -> (tm, B*D), f32 accumulation on the MXU
    support = jnp.dot(a, x, preferred_element_type=jnp.float32)
    # accumulate (support @ W_blk[k]) directly into the resident f32 output block
    o_ref[...] += jnp.dot(support.astype(w.dtype), w,
                          preferred_element_type=jnp.float32)

    @pl.when(k == pl.num_programs(1) - 1)
    def _():
        # bias (broadcast over node rows) + ReLU epilogue, in f32
        o_ref[...] = jnp.maximum(o_ref[...] + b_ref[...], 0.0)


def _pick_node_tile(n: int) -> int:
    """Largest row tile of A that keeps VMEM modest and divides N cleanly."""
    if n <= 512:
        return n  # block == full dim is always a legal block shape
    for t in (512, 256, 128, 64, 32, 16, 8):
        if n % t == 0:
            return t
    return n  # fall back to full rows


@functools.partial(jax.jit, static_argnames=("compute_dtype",))
def gcn_forward(A, x, W, b, *, compute_dtype=jnp.bfloat16):
    """
    A: (K, N, N) float32, x: (B, N, D) float32, W: (K*D, H) float32, b: (H,) float32
    returns: (B, N, H) float32
    """
    K, N, _ = A.shape
    B, _, D = x.shape
    H = W.shape[1]

    # ---- layout plumbing (wrapper-side, not in the hot loop) ----------------
    # Fold the batch into the lane axis.
    X = jnp.transpose(x, (1, 0, 2)).reshape(N, B * D)                  # (N, B*D)
    # Per-support weights, expanded block-diagonally over the batch so that a single
    # (N, B*D) @ (B*D, B*H) applies W[k] independently to every batch element.
    W_k = W.reshape(K, D, H)
    eye = jnp.eye(B, dtype=W.dtype)
    W_blk = jnp.einsum("bc,kdh->kbdch", eye, W_k).reshape(K, B * D, B * H)
    b_full = jnp.tile(b, B).reshape(1, B * H)                          # (1, B*H)

    A_c = A.astype(compute_dtype)
    X_c = X.astype(compute_dtype)
    W_c = W_blk.astype(compute_dtype)

    tm = _pick_node_tile(N)
    n_tiles = N // tm

    itemsize = jnp.dtype(compute_dtype).itemsize
    est_vmem = (2 * tm * N * itemsize              # A row tile, double-buffered
                + 2 * N * B * D * itemsize         # X
                + 2 * B * D * B * H * itemsize     # W_blk[k]
                + 2 * tm * B * H * 4               # resident f32 output tile
                + 8 * B * H * 4)                   # bias + slack
    vmem_limit = int(min(max(4 << 20, 2 * est_vmem), 64 << 20))

    out_flat = pl.pallas_call(
        gcn_kernel,
        out_shape=jax.ShapeDtypeStruct((N, B * H), jnp.float32),
        grid_spec=pltpu.PrefetchScalarGridSpec(
            num_scalar_prefetch=0,
            grid=(n_tiles, K),
            in_specs=[
                pl.BlockSpec((1, tm, N), lambda i, k: (k, i, 0)),          # A[k] rows
                pl.BlockSpec((N, B * D), lambda i, k: (0, 0)),             # X (resident)
                pl.BlockSpec((1, B * D, B * H), lambda i, k: (k, 0, 0)),   # W_blk[k]
                pl.BlockSpec((1, B * H), lambda i, k: (0, 0)),             # bias
            ],
            out_specs=pl.BlockSpec((tm, B * H), lambda i, k: (i, 0)),
        ),
        compiler_params=pltpu.CompilerParams(
            dimension_semantics=("parallel", "arbitrary"),
            vmem_limit_bytes=vmem_limit,
        ),
    )(A_c, X_c, W_c, b_full)

    # (N, B*H) -> (B, N, H)
    return jnp.transpose(out_flat.reshape(N, B, H), (1, 0, 2))


def gcn_reference(A, x, W, b):
    K = A.shape[0]
    supports = [jnp.einsum("ij,bjp->bip", A[k], x) for k in range(K)]
    support_cat = jnp.concatenate(supports, axis=-1)
    out = jnp.einsum("bip,pq->biq", support_cat, W) + b
    return jnp.maximum(out, 0.0)


if __name__ == "__main__":
    # Small shapes consistent with the module
    K = 3        # number of support adjacency matrices
    N = 16       # n_nodes
    D_in = 4     # input_dim
    H = 32       # hidden_dim
    B = 2        # batch_size

    key = jax.random.PRNGKey(0)
    k_a, k_x, k_w = jax.random.split(key, 3)

    A = jax.random.uniform(k_a, (K, N, N), dtype=jnp.float32)
    x = jax.random.normal(k_x, (B, N, D_in), dtype=jnp.float32)

    # Deterministic parameter init mirroring nn.init.xavier_normal_ / constant_(0)
    fan_in, fan_out = K * D_in, H
    std = (2.0 / (fan_in + fan_out)) ** 0.5
    W = std * jax.random.normal(k_w, (K * D_in, H), dtype=jnp.float32)
    b = jnp.zeros((H,), dtype=jnp.float32)

    ref = gcn_reference(A, x, W, b)

    # Full-f32 MXU path: must match the reference tightly.
    out_f32 = jax.block_until_ready(gcn_forward(A, x, W, b, compute_dtype=jnp.float32))
    assert out_f32.shape == (B, N, H)
    assert jnp.allclose(out_f32, ref, atol=1e-4, rtol=1e-4)

    # Default bf16 MXU inputs (f32 accumulation): bandwidth/throughput win,
    # validated against the f32 reference with a bf16-appropriate tolerance.
    out_bf16 = jax.block_until_ready(gcn_forward(A, x, W, b))
    assert out_bf16.shape == (B, N, H)
    assert jnp.allclose(out_bf16, ref, atol=2.5e-1, rtol=5e-2)

    print("KERNEL_OK")
</pallas_src>

<mosaic_0001>
module attributes {stable_mosaic.version = 11 : i64} {
  func.func @gcn_kernel(%arg0: i32, %arg1: i32, %arg2: memref<1x16x16xf32, #tpu.memory_space<vmem>>, %arg3: memref<16x8xf32, #tpu.memory_space<vmem>>, %arg4: memref<1x8x64xf32, #tpu.memory_space<vmem>>, %arg5: memref<1x64xf32, #tpu.memory_space<vmem>>, %arg6: memref<16x64xf32, #tpu.memory_space<vmem>>) attributes {dimension_semantics = [#tpu.dimension_semantics<parallel>, #tpu.dimension_semantics<arbitrary>], iteration_bounds = array<i64: 1, 3>, scalar_prefetch = 0 : i64, scratch_operands = 0 : i64, tpu.core_type = #tpu.core_type<tc>, window_params = [{transform_indices = @transform_0, window_bounds = array<i64: 1, 16, 16>}, {pipeline_mode = #tpu.pipeline_mode<synchronous>, transform_indices = @transform_1, window_bounds = array<i64: 16, 8>}, {transform_indices = @transform_2, window_bounds = array<i64: 1, 8, 64>}, {pipeline_mode = #tpu.pipeline_mode<synchronous>, transform_indices = @transform_3, window_bounds = array<i64: 1, 64>}, {transform_indices = @transform_4, window_bounds = array<i64: 16, 64>}]} {
    %c0_i32 = arith.constant 0 : i32
    %0 = arith.cmpi eq, %arg1, %c0_i32 : i32
    %1 = arith.extui %0 : i1 to i32
    %c0_i32_0 = arith.constant 0 : i32
    %2 = arith.cmpi ne, %1, %c0_i32_0 : i32
    scf.if %2 {
      %cst_14 = arith.constant 0.000000e+00 : f32
      %16 = vector.broadcast %cst_14 : f32 to vector<16x64xf32>
      %c0_15 = arith.constant 0 : index
      %c0_16 = arith.constant 0 : index
      %17 = vector.load %arg6[%c0_15, %c0_16] : memref<16x64xf32, #tpu.memory_space<vmem>>, vector<16x64xf32>
      tpu.vector_store %arg6[%c0_15, %c0_16], %16 {strides = array<i32>} : memref<16x64xf32, #tpu.memory_space<vmem>>, vector<16x64xf32>,
    } else {
    }
    %c0 = arith.constant 0 : index
    %c0_1 = arith.constant 0 : index
    %c0_2 = arith.constant 0 : index
    %3 = vector.load %arg2[%c0, %c0_1, %c0_2] : memref<1x16x16xf32, #tpu.memory_space<vmem>>, vector<1x16x16xf32>
    %4 = vector.shape_cast %3 : vector<1x16x16xf32> to vector<16x16xf32>
    %c0_3 = arith.constant 0 : index
    %c0_4 = arith.constant 0 : index
    %5 = vector.load %arg3[%c0_3, %c0_4] : memref<16x8xf32, #tpu.memory_space<vmem>>, vector<16x8xf32>
    %c0_5 = arith.constant 0 : index
    %c0_6 = arith.constant 0 : index
    %c0_7 = arith.constant 0 : index
    %6 = vector.load %arg4[%c0_5, %c0_6, %c0_7] : memref<1x8x64xf32, #tpu.memory_space<vmem>>, vector<1x8x64xf32>
    %7 = vector.shape_cast %6 : vector<1x8x64xf32> to vector<8x64xf32>
    %cst = arith.constant dense<0.000000e+00> : vector<16x8xf32>
    %8 = tpu.matmul %4, %5, %cst {dimension_numbers = #tpu.dot_dimension_numbers<[1], [0], [0], [1], [0, 0, 1, 1], [], []>} : vector<16x16xf32>, vector<16x8xf32>, vector<16x8xf32> -> vector<16x8xf32>
    %c0_8 = arith.constant 0 : index
    %c0_9 = arith.constant 0 : index
    %9 = vector.load %arg6[%c0_8, %c0_9] : memref<16x64xf32, #tpu.memory_space<vmem>>, vector<16x64xf32>
    %cst_10 = arith.constant dense<0.000000e+00> : vector<16x64xf32>
    %10 = tpu.matmul %8, %7, %cst_10 {dimension_numbers = #tpu.dot_dimension_numbers<[1], [0], [0], [1], [0, 0, 1, 1], [], []>} : vector<16x8xf32>, vector<8x64xf32>, vector<16x64xf32> -> vector<16x64xf32>
    %11 = arith.addf %9, %10 : vector<16x64xf32>
    %c0_11 = arith.constant 0 : index
    %c0_12 = arith.constant 0 : index
    %12 = vector.load %arg6[%c0_11, %c0_12] : memref<16x64xf32, #tpu.memory_space<vmem>>, vector<16x64xf32>
    tpu.vector_store %arg6[%c0_11, %c0_12], %11 {strides = array<i32>} : memref<16x64xf32, #tpu.memory_space<vmem>>, vector<16x64xf32>,
    %c2_i32 = arith.constant 2 : i32
    %13 = arith.cmpi eq, %arg1, %c2_i32 : i32
    %14 = arith.extui %13 : i1 to i32
    %c0_i32_13 = arith.constant 0 : i32
    %15 = arith.cmpi ne, %14, %c0_i32_13 : i32
    scf.if %15 {
      %c0_14 = arith.constant 0 : index
      %c0_15 = arith.constant 0 : index
      %16 = vector.load %arg6[%c0_14, %c0_15] : memref<16x64xf32, #tpu.memory_space<vmem>>, vector<16x64xf32>
      %c0_16 = arith.constant 0 : index
      %c0_17 = arith.constant 0 : index
      %17 = vector.load %arg5[%c0_16, %c0_17] : memref<1x64xf32, #tpu.memory_space<vmem>>, vector<1x64xf32>
      %18 = vector.broadcast %17 : vector<1x64xf32> to vector<16x64xf32>
      %19 = arith.addf %16, %18 : vector<16x64xf32>
      %cst_18 = arith.constant 0.000000e+00 : f32
      %20 = vector.broadcast %cst_18 : f32 to vector<16x64xf32>
      %21 = arith.maximumf %19, %20 : vector<16x64xf32>
      %c0_19 = arith.constant 0 : index
      %c0_20 = arith.constant 0 : index
      %22 = vector.load %arg6[%c0_19, %c0_20] : memref<16x64xf32, #tpu.memory_space<vmem>>, vector<16x64xf32>
      tpu.vector_store %arg6[%c0_19, %c0_20], %21 {strides = array<i32>} : memref<16x64xf32, #tpu.memory_space<vmem>>, vector<16x64xf32>,
    } else {
    }
    return
  }
  func.func @transform_0(%arg0: i32, %arg1: i32) -> (i32, i32, i32) {
    %c0_i32 = arith.constant 0 : i32
    %c0_i32_0 = arith.constant 0 : i32
    return %arg1, %arg0, %c0_i32 : i32, i32, i32
  }
  func.func @transform_1(%arg0: i32, %arg1: i32) -> (i32, i32) {
    %c0_i32 = arith.constant 0 : i32
    %c0_i32_0 = arith.constant 0 : i32
    %c0_i32_1 = arith.constant 0 : i32
    return %c0_i32, %c0_i32_0 : i32, i32
  }
  func.func @transform_2(%arg0: i32, %arg1: i32) -> (i32, i32, i32) {
    %c0_i32 = arith.constant 0 : i32
    %c0_i32_0 = arith.constant 0 : i32
    %c0_i32_1 = arith.constant 0 : i32
    return %arg1, %c0_i32, %c0_i32_0 : i32, i32, i32
  }
  func.func @transform_3(%arg0: i32, %arg1: i32) -> (i32, i32) {
    %c0_i32 = arith.constant 0 : i32
    %c0_i32_0 = arith.constant 0 : i32
    %c0_i32_1 = arith.constant 0 : i32
    return %c0_i32, %c0_i32_0 : i32, i32
  }
  func.func @transform_4(%arg0: i32, %arg1: i32) -> (i32, i32) {
    %c0_i32 = arith.constant 0 : i32
    %c0_i32_0 = arith.constant 0 : i32
    return %arg0, %c0_i32 : i32, i32
  }
}

</mosaic_0001>

<llo_original>
// kernel: tile.9
$region0: #{tile.9}
  %s0 = inlined_call_operand.vmem [shape: f32[2,32], index: 0, kind: input, shape index: {}]
  %s1 = inlined_call_operand.vmem [shape: f32[1,64], index: 1, kind: output, shape index: {}]
  $region1: #{tile.9} parent=0
    #allocation0 [shape = 'u8[4096]{0}', space=vmem, size = 0x1000, scoped, tag = 'scoped mem for output reshape']
    #allocation1 [shape = 'u8[4096]{0}', space=vmem, size = 0x1000, scoped, tag = 'scoped mem for input reshape']
    %s3 = sshllo.u32 0, 2
    %v4 = vld [vmem:[%s0] sm:%s3]
    %5 = vst [vmem:[#allocation1] sm:%s3] %v4
    %v6 = vld [vmem:[#allocation1] sm:$0x1]
    %vm7 = vcmask 261120
    %8 = vst.msk [vmem:[#allocation0] sm:$0x1] %vm7, %v6
    %s9 = scalar_lea.vmem [#allocation1], 1
    %v10 = vld [vmem:[%s9] sm:$0x1]
    %11 = vrot.lane.b32.xlu0 %v10, 32
    %v12 = vpop.permute.xlu0 %11
    %vm13 = vcmask 523520
    %14 = vst.msk [vmem:[#allocation0] sm:$0x1] %vm13, %v12
    %s16 = sshllo.u32 0, 1
    %v18 = vld [vmem:[#allocation0] sm:%s16]
    %s19 = sshllo.u32 0, 1
    %20 = vst [vmem:[%s1] sm:%s19] %v18

// kernel: tile.8
$region0: #{tile.8}
  #allocation0 [shape = 's32[1]{0}', space=sflag, size = 0x4, scoped, tag = 'scoped memory for tile.8']
  %s0 = inlined_call_operand.vmem [shape: f32[32], index: 0, kind: input, shape index: {}]
  %s1 = inlined_call_operand.vmem [shape: f32[2,32], index: 1, kind: output, shape index: {}]
  // Predicated region
  $region2: #{tile.8} parent=0 // pred_check
    _
  $region3: #{tile.8} parent=0 // pred_check_branch
    %3 = sbr.rel (0) target = $region5
  $region4: #{tile.8} parent=0 // pred_region
    _
  $region5: #{tile.8} parent=0 // pred_fallthru
    _
  %v4 = vld [vmem:[%s0] ss:$0 sm:$0xff]
  %5 = vst [vmem:[%s1] sm:$0x3] %v4

// kernel: gcn_forward.1
$region0: #{gcn_forward.1}
  #allocation0 [shape = 'u32[]', space=smem, size = 0x4, offset = 0x4, fixed_abs, tag = 'smem constant byte address 0x4 - core index']
  #allocation1 [shape = 'u32[144,128]{1,0:T(1,128)}', space=vmem, size = 0x12000, scoped, tag = 'internal scratch']
  %s0 = inlined_call_operand.vmem [shape: f32[3,16,16], index: 0, kind: input, shape index: {}]
  %s1 = inlined_call_operand.vmem [shape: f32[16,8], index: 1, kind: input, shape index: {}]
  %s2 = inlined_call_operand.vmem [shape: f32[3,8,64], index: 2, kind: input, shape index: {}]
  %s3 = inlined_call_operand.vmem [shape: f32[1,64], index: 3, kind: input, shape index: {}]
  %s4 = inlined_call_operand.vmem [shape: f32[16,64], index: 4, kind: output, shape index: {}]
  %s5 = sld [smem:[#allocation0]]
  $region57: #{gcn_forward.1} parent=0
    _
  %s7 = ssub.s32 1, %s5
  %s8 = scalar_select 0, %s7, %s5
  loop: start=0, step=1, limit=5
  $region2: #{gcn_forward.1} parent=0 // loop_pre_header
    _
  $region3: #{gcn_forward.1} parent=0 // loop_header
    %s10 = sphi 0, %s14
    %p11 = scmp.ge.s32.totalorder %s10, 5
    %s17 = sphi 0, %s29
    %s18 = sphi 0, %s25
    %s19 = sphi 0, %s17
    %s20 = sphi 0, %s18
    %s21 = sphi 0, %s19
    %s22 = sphi 0, %s20
    %s34 = sphi 0, %s36
    %s37 = sphi 0, %s34
    %s38 = sphi 0, %s37
    %s54 = sphi 0, %s38
    %s58 = sphi 0, %s58
    %s60 = sphi 0, %s58
    %s61 = sphi 0, %s60
    %s75 = sphi 0, %s61
    %s81 = sphi 0, %s83
    %s84 = sphi 0, %s81
    %s85 = sphi 0, %s84
    %s101 = sphi 0, %s85
    %s105 = sphi 0, %s105
    %s107 = sphi 0, %s105
    %s108 = sphi 0, %s107
    %s122 = sphi 0, %s108
    %s128 = sphi 0, %s130
    %s131 = sphi 0, %s128
    %s132 = sphi 0, %s131
    %s148 = sphi 0, %s132
  $region4: #{gcn_forward.1} parent=0 // loop_header_branch
    %13 = sbr.rel (%p11) target = $region8
  $region5: #{gcn_forward.1} parent=0 // loop_body
    %s15 = ssub.s32 %s10, 1
    %s16 = ssub.s32 %s10, 2
    %s23 = sadd.s32 1, %s18
    %p24 = scmp.ge.s32.totalorder %s23, 3
    %s25 = scalar_select %p24, 0, %s23
    %s26 = sadd.s32 1, %s17
    %s27 = scalar_select %p24, %s26, %s17
    %p28 = scmp.ge.s32.totalorder %s27, 1
    %s29 = scalar_select %p28, 0, %s27
    %s30 = ssub.s32 %s18, %s25
    %s31 = ssub.s32 %s17, %s29
    %s32 = sor.u32 %s30, %s31
    %p33 = scmp.eq.s32.totalorder %s32, 0
    %s35 = sadd.s32 %s34, 1
    %s36 = scalar_select %p33, %s34, %s35
    %p39 = pneg %p33
    %p40 = scmp.eq.s32.totalorder %s10, 2
    %p41 = por %p39, %p40
    %p42 = scmp.ne.s32.totalorder %s34, %s37
    %p43 = scmp.eq.s32.totalorder %s10, 0
    %p44 = por %p42, %p43
    %p45 = scmp.ne.s32.totalorder %s34, %s37
    %p46 = scmp.eq.s32.totalorder %s15, 2
    %p47 = por %p45, %p46
    %p48 = scmp.ne.s32.totalorder %s37, %s38
    %p49 = scmp.eq.s32.totalorder %s15, 0
    %p50 = por %p48, %p49
    %p51 = scmp.ne.s32.totalorder %s37, %s38
    %p52 = scmp.eq.s32.totalorder %s16, 2
    %p53 = por %p51, %p52
    %p55 = scmp.ne.s32.totalorder %s38, %s54
    %p56 = scmp.eq.s32.totalorder %s16, 0
    %p57 = por %p55, %p56
    %s59 = sadd.s32 %s58, 1
    %p62 = scmp.eq.s32.totalorder %s10, 2
    %p63 = scmp.ne.s32.totalorder %s58, %s60
    %p64 = scmp.eq.s32.totalorder %s10, 0
    %p65 = por %p63, %p64
    %p66 = scmp.ne.s32.totalorder %s58, %s60
    %p67 = scmp.eq.s32.totalorder %s15, 2
    %p68 = por %p66, %p67
    %p69 = scmp.ne.s32.totalorder %s60, %s61
    %p70 = scmp.eq.s32.totalorder %s15, 0
    %p71 = por %p69, %p70
    %p72 = scmp.ne.s32.totalorder %s60, %s61
    %p73 = scmp.eq.s32.totalorder %s16, 2
    %p74 = por %p72, %p73
    %p76 = scmp.ne.s32.totalorder %s61, %s75
    %p77 = scmp.eq.s32.totalorder %s16, 0
    %p78 = por %p76, %p77
    %s79 = ssub.s32 %s18, %s25
    %p80 = scmp.eq.s32.totalorder %s79, 0
    %s82 = sadd.s32 %s81, 1
    %s83 = scalar_select %p80, %s81, %s82
    %p86 = pneg %p80
    %p87 = scmp.eq.s32.totalorder %s10, 2
    %p88 = por %p86, %p87
    %p89 = scmp.ne.s32.totalorder %s81, %s84
    %p90 = scmp.eq.s32.totalorder %s10, 0
    %p91 = por %p89, %p90
    %p92 = scmp.ne.s32.totalorder %s81, %s84
    %p93 = scmp.eq.s32.totalorder %s15, 2
    %p94 = por %p92, %p93
    %p95 = scmp.ne.s32.totalorder %s84, %s85
    %p96 = scmp.eq.s32.totalorder %s15, 0
    %p97 = por %p95, %p96
    %p98 = scmp.ne.s32.totalorder %s84, %s85
    %p99 = scmp.eq.s32.totalorder %s16, 2
    %p100 = por %p98, %p99
    %p102 = scmp.ne.s32.totalorder %s85, %s101
    %p103 = scmp.eq.s32.totalorder %s16, 0
    %p104 = por %p102, %p103
    %s106 = sadd.s32 %s105, 1
    %p109 = scmp.eq.s32.totalorder %s10, 2
    %p110 = scmp.ne.s32.totalorder %s105, %s107
    %p111 = scmp.eq.s32.totalorder %s10, 0
    %p112 = por %p110, %p111
    %p113 = scmp.ne.s32.totalorder %s105, %s107
    %p114 = scmp.eq.s32.totalorder %s15, 2
    %p115 = por %p113, %p114
    %p116 = scmp.ne.s32.totalorder %s107, %s108
    %p117 = scmp.eq.s32.totalorder %s15, 0
    %p118 = por %p116, %p117
    %p119 = scmp.ne.s32.totalorder %s107, %s108
    %p120 = scmp.eq.s32.totalorder %s16, 2
    %p121 = por %p119, %p120
    %p123 = scmp.ne.s32.totalorder %s108, %s122
    %p124 = scmp.eq.s32.totalorder %s16, 0
    %p125 = por %p123, %p124
    %s126 = ssub.s32 %s17, %s29
    %p127 = scmp.eq.s32.totalorder %s126, 0
    %s129 = sadd.s32 %s128, 1
    %s130 = scalar_select %p127, %s128, %s129
    %p133 = pneg %p127
    %p134 = scmp.eq.s32.totalorder %s10, 2
    %p135 = por %p133, %p134
    %p136 = scmp.ne.s32.totalorder %s128, %s131
    %p137 = scmp.eq.s32.totalorder %s10, 0
    %p138 = por %p136, %p137
    %p139 = scmp.ne.s32.totalorder %s128, %s131
    %p140 = scmp.eq.s32.totalorder %s15, 2
    %p141 = por %p139, %p140
    %p142 = scmp.ne.s32.totalorder %s131, %s132
    %p143 = scmp.eq.s32.totalorder %s15, 0
    %p144 = por %p142, %p143
    %p145 = scmp.ne.s32.totalorder %s131, %s132
    %p146 = scmp.eq.s32.totalorder %s16, 2
    %p147 = por %p145, %p146
    %p149 = scmp.ne.s32.totalorder %s132, %s148
    %p150 = scmp.eq.s32.totalorder %s16, 0
    %p151 = por %p149, %p150
    %p152 = scmp.le.s32.totalorder 1, %s10
    %p153 = scmp.lt.s32.totalorder %s10, 4
    %p154 = pnand %p152, %p153
    %p155 = pneg %p154
    // Predicated region
    $region9: #{gcn_forward.1} parent=5 // pred_check
      _
    $region10: #{gcn_forward.1} parent=5 // pred_check_branch
      %157 = sbr.rel (%p154) target = $region12
    $region11: #{gcn_forward.1} parent=5 // pred_region
      %s158 = ssub.s32 %s10, 1
      // Predicated region
      $region13: #{gcn_forward.1} parent=11 // pred_check
        %p159 = pneg %p71
      $region14: #{gcn_forward.1} parent=11 // pred_check_branch
        %161 = sbr.rel (%p159) target = $region16
      $region15: #{gcn_forward.1} parent=11 // pred_region
        _
      $region16: #{gcn_forward.1} parent=11 // pred_fallthru
        _
      // Predicated region
      $region17: #{gcn_forward.1} parent=11 // pred_check
        %p162 = pneg %p118
      $region18: #{gcn_forward.1} parent=11 // pred_check_branch
        %164 = sbr.rel (%p162) target = $region20
      $region19: #{gcn_forward.1} parent=11 // pred_region
        _
      $region20: #{gcn_forward.1} parent=11 // pred_fallthru
        _
    $region12: #{gcn_forward.1} parent=5 // pred_fallthru
      _
    %p165 = scmp.lt.s32.totalorder %s10, 3
    // Predicated region
    $region21: #{gcn_forward.1} parent=5 // pred_check
      %p166 = pneg %p165
    $region22: #{gcn_forward.1} parent=5 // pred_check_branch
      %168 = sbr.rel (%p166) target = $region24
    $region23: #{gcn_forward.1} parent=5 // pred_region
      // Predicated region
      $region25: #{gcn_forward.1} parent=23 // pred_check
        %p169 = pneg %p44
      $region26: #{gcn_forward.1} parent=23 // pred_check_branch
        %171 = sbr.rel (%p169) target = $region28
      $region27: #{gcn_forward.1} parent=23 // pred_region
        %s172 = smul.u32 2, %s17
        %p173 = scmp.lt.s32.totalorder %s18, 2
        %s174 = scalar_select %p173, %s18, 2
        %p175 = scmp.lt.s32.totalorder %s172, 1
        %s176 = scalar_select %p175, %s172, 1
        %s177 = smul.addr %s174, 2
        %s178 = sadd.s32 %s176, %s177
        %s179 = smul.addr %s178, 8
        %s180 = scalar_lea.vmem %s0, %s179
        %s181 = smul.u32 2, %s17
      $region28: #{gcn_forward.1} parent=23 // pred_fallthru
        _
      // Predicated region
      $region29: #{gcn_forward.1} parent=23 // pred_check
        %p182 = pneg %p91
      $region30: #{gcn_forward.1} parent=23 // pred_check_branch
        %184 = sbr.rel (%p182) target = $region32
      $region31: #{gcn_forward.1} parent=23 // pred_region
        %p185 = scmp.lt.s32.totalorder %s18, 2
        %s186 = scalar_select %p185, %s18, 2
        %s187 = smul.addr %s186, 8
        %s188 = scalar_lea.vmem %s2, %s187
      $region32: #{gcn_forward.1} parent=23 // pred_fallthru
        _
    $region24: #{gcn_forward.1} parent=5 // pred_fallthru
      _
    %p189 = scmp.le.s32.totalorder 1, %s10
    %p190 = scmp.lt.s32.totalorder %s10, 4
    %p191 = pnand %p189, %p190
    %p192 = pneg %p191
    // Predicated region
    $region33: #{gcn_forward.1} parent=5 // pred_check
      _
    $region34: #{gcn_forward.1} parent=5 // pred_check_branch
      %194 = sbr.rel (%p191) target = $region36
    $region35: #{gcn_forward.1} parent=5 // pred_region
      %s195 = ssub.s32 %s10, 1
      %s196 = smul.u32 2, %s19
      %p197 = scmp.lt.s32.totalorder %s20, 2
      %s198 = scalar_select %p197, %s20, 2
      %p199 = scmp.lt.s32.totalorder %s196, 1
      %s200 = scalar_select %p199, %s196, 1
      %s201 = smul.addr %s198, 2
      %s202 = sadd.s32 %s200, %s201
      %s203 = smul.addr %s202, 8
      %s204 = scalar_lea.vmem %s0, %s203
      %p205 = pneg %p50
      %p206 = pneg %p47
      %p207 = pneg %p71
      %p208 = pneg %p68
      %p209 = scmp.lt.s32.totalorder %s20, 2
      %s210 = scalar_select %p209, %s20, 2
      %s211 = smul.addr %s210, 8
      %s212 = scalar_lea.vmem %s2, %s211
      %p213 = pneg %p97
      %p214 = pneg %p94
      %p215 = pneg %p118
      %p216 = pneg %p115
      %p217 = pneg %p144
      %p218 = pneg %p141
      %s219 = smul.u32 2, %s19
      %p220 = scmp.lt.s32.totalorder %s219, 1
      %s221 = scalar_select %p220, %s219, 1
      %s222 = smul.addr %s221, 8
      %s223 = scalar_lea.vmem %s4, %s222
      %s224 = smul.u32 2, %s19
      %p225 = scmp.lt.s32.totalorder %s20, 2
      %s226 = scalar_select %p225, %s20, 2
      %p227 = scmp.lt.s32.totalorder %s224, 1
      %s228 = scalar_select %p227, %s224, 1
      %s229 = smul.addr %s226, 2
      %s230 = sadd.s32 %s228, %s229
      %s231 = smul.addr %s230, 8
      %s232 = scalar_lea.vmem %s0, %s231
      %s233 = smul.u32 2, %s19
      %p234 = scmp.lt.s32.totalorder %s20, 2
      %s235 = scalar_select %p234, %s20, 2
      %s236 = smul.addr %s235, 8
      %s237 = scalar_lea.vmem %s2, %s236
      %s238 = smul.u32 2, %s19
      %p239 = scmp.lt.s32.totalorder %s238, 1
      %s240 = scalar_select %p239, %s238, 1
      %s241 = smul.addr %s240, 8
      %s242 = scalar_lea.vmem %s4, %s241
      %s243 = smul.u32 2, %s19
      %p244 = scmp.eq.s32.totalorder %s20, 0
      // Predicated region
      $region37: #{gcn_forward.1} parent=35 // pred_check
        %p245 = pneg %p244
      $region38: #{gcn_forward.1} parent=35 // pred_check_branch
        %247 = sbr.rel (%p245) target = $region40
      $region39: #{gcn_forward.1} parent=35 // pred_region
        %vm248 = vcmask 523264
        %249 = vst.msk [vmem:[%s242] sm:$0xff] %vm248, 0.0
        %250 = vst.msk [vmem:[%s242 + $0x8] sm:$0xff] %vm248, 0.0
      $region40: #{gcn_forward.1} parent=35 // pred_fallthru
        _
      %v251 = vld [vmem:[%s232] sm:$0xff]
      %v252 = vld [vmem:[%s232 + $0x8] sm:$0xff]
      %v253 = vld [vmem:[%s1] sm:$0xff]
      %v254 = vld [vmem:[%s1 + $0x8] sm:$0xff]
      %v255 = vld [vmem:[%s237] sm:$0xff]
      %vm256 = vcmask 130048
      %v258 = vsel %vm256, %v251, 0
      %v261 = vsel %vm256, %v252, 0
      %263 = vmatprep.subr.mxu0 0.0
      %264 = vmatpush1.msra.mxu0 %v253
      %265 = vmatprep.subr.mxu0 0.0
      %266 = vmatpush1.msra.mxu0 %v254
      %267 = vmatprep.subr.mxu0 0.0
      %268 = vmatpush1.msra.mxu0 0.0
      %269 = vmatprep.subr.mxu0 0.0
      %270 = vmatpush1.msra.mxu0 0.0
      %271 = vmatprep.subr.mxu0 0.0
      %272 = vmatpush1.msra.mxu0 0.0
      %273 = vmatprep.subr.mxu0 0.0
      %274 = vmatpush1.msra.mxu0 0.0
      %275 = vmatprep.subr.mxu0 0.0
      %276 = vmatpush1.msra.mxu0 0.0
      %277 = vmatprep.subr.mxu0 0.0
      %278 = vmatpush1.msra.mxu0 0.0
      %279 = vmatprep.subr.mxu0 0.0
      %280 = vmatpush1.msra.mxu0 0.0
      %281 = vmatprep.subr.mxu0 0.0
      %282 = vmatpush1.msra.mxu0 0.0
      %283 = vmatprep.subr.mxu0 0.0
      %284 = vmatpush1.msra.mxu0 0.0
      %285 = vmatprep.subr.mxu0 0.0
      %286 = vmatpush1.msra.mxu0 0.0
      %287 = vmatprep.subr.mxu0 0.0
      %288 = vmatpush1.msra.mxu0 0.0
      %289 = vmatprep.subr.mxu0 0.0
      %290 = vmatpush1.msra.mxu0 0.0
      %291 = vmatprep.subr.mxu0 0.0
      %292 = vmatpush1.msra.mxu0 0.0
      %293 = vmatprep.subr.mxu0 0.0
      %294 = vmatpush1.msra.mxu0 0.0
      %295 = vmatprep.subr.mxu0 0.0
      %296 = vmatpush1.msra.mxu0 0.0
      %297 = vmatprep.subr.mxu0 0.0
      %298 = vmatpush1.msra.mxu0 0.0
      %299 = vmatprep.subr.mxu0 0.0
      %300 = vmatpush1.msra.mxu0 0.0
      %301 = vmatprep.subr.mxu0 0.0
      %302 = vmatpush1.msra.mxu0 0.0
      %303 = vmatprep.subr.mxu0 0.0
      %304 = vmatpush1.msra.mxu0 0.0
      %305 = vmatprep.subr.mxu0 0.0
      %306 = vmatpush1.msra.mxu0 0.0
      %307 = vmatprep.subr.mxu0 0.0
      %308 = vmatpush1.msra.mxu0 0.0
      %309 = vmatprep.subr.mxu0 0.0
      %310 = vmatpush1.msra.mxu0 0.0
      %311 = vmatprep.subr.mxu0 0.0
      %312 = vmatpush1.msra.mxu0 0.0
      %313 = vmatprep.subr.mxu0 0.0
      %314 = vmatpush1.msra.mxu0 0.0
      %315 = vmatprep.subr.mxu0 0.0
      %316 = vmatpush1.msra.mxu0 0.0
      %317 = vmatprep.subr.mxu0 0.0
      %318 = vmatpush1.msra.mxu0 0.0
      %319 = vmatprep.subr.mxu0 0.0
      %320 = vmatpush1.msra.mxu0 0.0
      %321 = vmatprep.subr.mxu0 0.0
      %322 = vmatpush1.msra.mxu0 0.0
      %323 = vmatprep.subr.mxu0 0.0
      %324 = vmatpush1.msra.mxu0 0.0
      %325 = vmatprep.subr.mxu0 0.0
      %326 = vmatpush1.msra.mxu0 0.0
      %327 = vmatprep.mubr.f32.mxu0 0.0
      %328 = vmatmul.mubr.f32.gmra.mrb[0].mxu0 %v258
      %v329 = vpop.f32.mrb[0].mxu0
      %v330 = vadd.f32 0.0, %v329
      %v331 = vpop.f32.mrb[0].mxu0
      %332 = vmatprep.mubr.f32.mxu0 0.0
      %333 = vmatmul.mubr.f32.gmra.mrb[0].mxu0 %v261
      %v334 = vpop.f32.mrb[0].mxu0
      %v335 = vadd.f32 0.0, %v334
      %v336 = vpop.f32.mrb[0].mxu0
      %337 = vdwg.mxu0
      %v338 = vld [vmem:[%s242] sm:$0xff]
      %v339 = vld [vmem:[%s242 + $0x8] sm:$0xff]
      %vm340 = vcmask 64512
      %v342 = vsel %vm340, %v330, 0
      %v345 = vsel %vm340, %v335, 0
      %347 = vmatprep.subr.mxu0 0.0
      %348 = vmatpush1.msra.mxu0 %v255
      %349 = vmatprep.subr.mxu0 0.0
      %350 = vmatpush1.msra.mxu0 0.0
      %351 = vmatprep.subr.mxu0 0.0
      %352 = vmatpush1.msra.mxu0 0.0
      %353 = vmatprep.subr.mxu0 0.0
      %354 = vmatpush1.msra.mxu0 0.0
      %355 = vmatprep.subr.mxu0 0.0
      %356 = vmatpush1.msra.mxu0 0.0
      %357 = vmatprep.subr.mxu0 0.0
      %358 = vmatpush1.msra.mxu0 0.0
      %359 = vmatprep.subr.mxu0 0.0
      %360 = vmatpush1.msra.mxu0 0.0
      %361 = vmatprep.subr.mxu0 0.0
      %362 = vmatpush1.msra.mxu0 0.0
      %363 = vmatprep.subr.mxu0 0.0
      %364 = vmatpush1.msra.mxu0 0.0
      %365 = vmatprep.subr.mxu0 0.0
      %366 = vmatpush1.msra.mxu0 0.0
      %367 = vmatprep.subr.mxu0 0.0
      %368 = vmatpush1.msra.mxu0 0.0
      %369 = vmatprep.subr.mxu0 0.0
      %370 = vmatpush1.msra.mxu0 0.0
      %371 = vmatprep.subr.mxu0 0.0
      %372 = vmatpush1.msra.mxu0 0.0
      %373 = vmatprep.subr.mxu0 0.0
      %374 = vmatpush1.msra.mxu0 0.0
      %375 = vmatprep.subr.mxu0 0.0
      %376 = vmatpush1.msra.mxu0 0.0
      %377 = vmatprep.subr.mxu0 0.0
      %378 = vmatpush1.msra.mxu0 0.0
      %379 = vmatprep.subr.mxu0 0.0
      %380 = vmatpush1.msra.mxu0 0.0
      %381 = vmatprep.subr.mxu0 0.0
      %382 = vmatpush1.msra.mxu0 0.0
      %383 = vmatprep.subr.mxu0 0.0
      %384 = vmatpush1.msra.mxu0 0.0
      %385 = vmatprep.subr.mxu0 0.0
      %386 = vmatpush1.msra.mxu0 0.0
      %387 = vmatprep.subr.mxu0 0.0
      %388 = vmatpush1.msra.mxu0 0.0
      %389 = vmatprep.subr.mxu0 0.0
      %390 = vmatpush1.msra.mxu0 0.0
      %391 = vmatprep.subr.mxu0 0.0
      %392 = vmatpush1.msra.mxu0 0.0
      %393 = vmatprep.subr.mxu0 0.0
      %394 = vmatpush1.msra.mxu0 0.0
      %395 = vmatprep.subr.mxu0 0.0
      %396 = vmatpush1.msra.mxu0 0.0
      %397 = vmatprep.subr.mxu0 0.0
      %398 = vmatpush1.msra.mxu0 0.0
      %399 = vmatprep.subr.mxu0 0.0
      %400 = vmatpush1.msra.mxu0 0.0
      %401 = vmatprep.subr.mxu0 0.0
      %402 = vmatpush1.msra.mxu0 0.0
      %403 = vmatprep.subr.mxu0 0.0
      %404 = vmatpush1.msra.mxu0 0.0
      %405 = vmatprep.subr.mxu0 0.0
      %406 = vmatpush1.msra.mxu0 0.0
      %407 = vmatprep.subr.mxu0 0.0
      %408 = vmatpush1.msra.mxu0 0.0
      %409 = vmatprep.subr.mxu0 0.0
      %410 = vmatpush1.msra.mxu0 0.0
      %411 = vmatprep.mubr.f32.mxu0 0.0
      %412 = vmatmul.mubr.f32.gmra.mrb[0].mxu0 %v342
      %v413 = vpop.f32.mrb[0].mxu0
      %v414 = vadd.f32 0.0, %v413
      %v415 = vpop.f32.mrb[0].mxu0
      %416 = vmatprep.mubr.f32.mxu0 0.0
      %417 = vmatmul.mubr.f32.gmra.mrb[0].mxu0 %v345
      %v418 = vpop.f32.mrb[0].mxu0
      %v419 = vadd.f32 0.0, %v418
      %v420 = vpop.f32.mrb[0].mxu0
      %421 = vdwg.mxu0
      %v422 = vadd.f32 %v338, %v414
      %v423 = vadd.f32 %v339, %v419
      %vm424 = vcmask 523264
      %425 = vst.msk [vmem:[%s242] sm:$0xff] %vm424, %v422
      %426 = vst.msk [vmem:[%s242 + $0x8] sm:$0xff] %vm424, %v423
      %p427 = scmp.eq.s32.totalorder %s20, 2
      // Predicated region
      $region41: #{gcn_forward.1} parent=35 // pred_check
        %p428 = pneg %p427
      $region42: #{gcn_forward.1} parent=35 // pred_check_branch
        %430 = sbr.rel (%p428) target = $region44
      $region43: #{gcn_forward.1} parent=35 // pred_region
        %v431 = vld [vmem:[%s242] sm:$0xff]
        %v432 = vld [vmem:[%s242 + $0x8] sm:$0xff]
        %v433 = vld [vmem:[%s3] sm:$0x1]
        %v435 = vlaneseq
        %v436 = vshrl.u32 %v435, 7
        %v437 = vsub.s32 0, %v436
        %v438 = vrot.slane %v433, %v437
        %v440 = vadd.f32 %v431, %v438
        %v441 = vadd.f32 %v432, %v438
        %v442 = vmax.f32 %v440, 0.0
        %v443 = vmax.f32 %v441, 0.0
        %444 = vst.msk [vmem:[%s242] sm:$0xff] %vm424, %v442
        %445 = vst.msk [vmem:[%s242 + $0x8] sm:$0xff] %vm424, %v443
      $region44: #{gcn_forward.1} parent=35 // pred_fallthru
        _
      %s446 = smul.u32 2, %s19
      %p447 = scmp.lt.s32.totalorder %s446, 1
      %s448 = scalar_select %p447, %s446, 1
      %s449 = smul.addr %s448, 8
      %s450 = scalar_lea.vmem %s4, %s449
      // Predicated region
      $region45: #{gcn_forward.1} parent=35 // pred_check
        %p451 = pneg %p141
      $region46: #{gcn_forward.1} parent=35 // pred_check_branch
        %453 = sbr.rel (%p451) target = $region48
      $region47: #{gcn_forward.1} parent=35 // pred_region
        %s454 = smul.u32 2, %s19
      $region48: #{gcn_forward.1} parent=35 // pred_fallthru
        _
      // Predicated region
      $region49: #{gcn_forward.1} parent=35 // pred_check
        %p455 = pneg %p141
      $region50: #{gcn_forward.1} parent=35 // pred_check_branch
        %457 = sbr.rel (%p455) target = $region52
      $region51: #{gcn_forward.1} parent=35 // pred_region
        %s458 = smul.u32 2, %s19
        %p459 = scmp.lt.s32.totalorder %s458, 1
        %s460 = scalar_select %p459, %s458, 1
        %s461 = smul.addr %s460, 8
        %s462 = scalar_lea.vmem %s4, %s461
      $region52: #{gcn_forward.1} parent=35 // pred_fallthru
        _
    $region36: #{gcn_forward.1} parent=5 // pred_fallthru
      _
    %p463 = scmp.le.s32.totalorder 2, %s10
    // Predicated region
    $region53: #{gcn_forward.1} parent=5 // pred_check
      %p464 = pneg %p463
    $region54: #{gcn_forward.1} parent=5 // pred_check_branch
      %466 = sbr.rel (%p464) target = $region56
    $region55: #{gcn_forward.1} parent=5 // pred_region
      %s467 = ssub.s32 %s10, 2
    $region56: #{gcn_forward.1} parent=5 // pred_fallthru
      _
  $region6: #{gcn_forward.1} parent=0 // loop_footer
    %s14 = sadd.s32 1, %s10
  $region7: #{gcn_forward.1} parent=0 // loop_footer_branch
    %9 = sbr.rel target = $region3
  $region8: #{gcn_forward.1} parent=0 // loop_exit
    _

</llo_original>
